<compile_context>
chip_gen: v7x
topology: tpu7x:2x2x1
jax: 0.10.0
libtpu: 0.0.40
codegen_flags: <defaults>
</compile_context>

<pallas_src>
import functools

import jax
import jax.numpy as jnp
from jax.experimental import pallas as pl
from jax.experimental.pallas import tpu as pltpu

_LANES = 128


def _is_v7x():
    try:
        kind = jax.devices()[0].device_kind.lower()
        return ("v7" in kind) or ("7x" in kind)
    except Exception:  # pragma: no cover - defensive
        return False


def _laplacian_kernel(pred_ref, gt_ref, conf_ref, sum_ref, cnt_ref, *,
                      a, inv_2b, tile_rows, rows, tiles_per_split,
                      needs_partial):
    c = pl.program_id(0)   # split axis (parallel / core-parallel)
    i = pl.program_id(1)   # reduction axis within the split

    @pl.when(i == 0)
    def _():
        sum_ref[...] = jnp.zeros_like(sum_ref)
        cnt_ref[...] = jnp.zeros_like(cnt_ref)

    def _accumulate(extra_row_mask):
        gt = gt_ref[...].astype(jnp.float32)
        pred = pred_ref[...].astype(jnp.float32)
        conf_raw = conf_ref[...].astype(jnp.float32)

        mask = gt > 0.0
        if extra_row_mask is not None:
            mask = mask & extra_row_mask

        # 2*a*(sigmoid(x/b) - 0.5) == a * tanh(x * (0.5/b))  -- one EUP op.
        conf = a * jnp.tanh(conf_raw * inv_2b)
        # |gt - pred| / exp(conf) + conf  ==  |gt - pred| * exp(-conf) + conf
        val = jnp.abs(gt - pred) * jnp.exp(-conf) + conf
        # One vselect (same VALU cost as val * maskf) and also robust to
        # NaN/Inf garbage in masked-off elements.
        val = jnp.where(mask, val, 0.0)
        maskf = mask.astype(jnp.float32)

        # (tile_rows,128) -> (tile_rows//8, 8, 128) is layout-preserving; the
        # axis-0 sum is pure VALU adds (no XLU).  Exactly one cross-lane
        # reduce happens later in tiny JAX glue.
        sum_ref[...] += jnp.sum(val.reshape(-1, 8, _LANES), axis=0)
        cnt_ref[...] += jnp.sum(maskf.reshape(-1, 8, _LANES), axis=0)

    if not needs_partial:
        # All tiles are full and exactly cover the slab: mask-free hot path.
        _accumulate(None)
    else:
        # Logical (un-clamped) row offset of this tile; the index_map clamps
        # the DMA so duplicate tiles (valid_rows <= 0) simply re-read the last
        # real block and are fully masked out here.
        start_row = (c * tiles_per_split + i) * tile_rows
        valid_rows = rows - start_row

        @pl.when(valid_rows >= tile_rows)      # hot path: no row mask at all
        def _():
            _accumulate(None)

        @pl.when(valid_rows < tile_rows)       # ragged last tile / duplicates
        def _():
            row_ids = jax.lax.broadcasted_iota(
                jnp.int32, (tile_rows, _LANES), 0)
            _accumulate(row_ids < valid_rows)


def _jnp_tail(pred, gt, conf, a, inv_2b):
    """Masked sum/count of a tiny ragged tail (< 128 elements), pure JAX."""
    mask = gt > 0
    conff = a * jnp.tanh(conf.astype(jnp.float32) * inv_2b)
    val = (jnp.abs(gt.astype(jnp.float32) - pred.astype(jnp.float32))
           * jnp.exp(-conff) + conff)
    return (jnp.sum(jnp.where(mask, val, 0.0)),
            jnp.sum(mask.astype(jnp.float32)))


def laplacian_loss_bounded2(predictions, gt, conf, *, a=3.0, b=3.0,
                            tile_rows=2048, num_splits=2, core_parallel=None):
    """Masked-mean Laplacian loss (bounded-2 variant).  Returns a scalar f32.

    Notes:
      * bf16 (or any) input dtypes are accepted directly and upcast in-kernel;
        do NOT pre-cast to f32 in the caller (it doubles HBM traffic).
      * An empty mask (no gt > 0) yields NaN, matching PyTorch's mean over an
        empty selection.
      * core_parallel=None auto-enables two-TensorCore sharding on v7x only.
    """
    a = float(a)
    inv_2b = float(0.5 / float(b))

    pred_f = predictions.reshape(-1)
    gt_f = gt.reshape(-1)
    conf_f = conf.reshape(-1)
    n = pred_f.shape[0]

    n_main = (n // _LANES) * _LANES          # lane-aligned prefix, no padding
    rows = n_main // _LANES

    tail_sum = jnp.float32(0.0)
    tail_cnt = jnp.float32(0.0)
    if n_main < n:                            # ragged tail: < 128 elements
        tail_sum, tail_cnt = _jnp_tail(
            pred_f[n_main:], gt_f[n_main:], conf_f[n_main:], a, inv_2b)

    if rows == 0:
        return (tail_sum / tail_cnt).astype(jnp.float32)

    # --- static tile geometry -------------------------------------------
    tile_rows = int(tile_rows)
    tile_rows = min(tile_rows, -(-rows // 8) * 8)   # no bigger than needed
    tile_rows = max(8, (tile_rows // 8) * 8)        # multiple of 8 (sublane)
    total_tiles = -(-rows // tile_rows)
    num_splits = max(1, min(int(num_splits), total_tiles))
    tiles_per_split = -(-total_tiles // num_splits)
    needs_partial = (rows % tile_rows != 0) or \
                    (num_splits * tiles_per_split != total_tiles)

    pred2 = pred_f[:n_main].reshape(rows, _LANES)
    gt2 = gt_f[:n_main].reshape(rows, _LANES)
    conf2 = conf_f[:n_main].reshape(rows, _LANES)

    def in_map(c, i):
        # Clamp so an over-covered (duplicate) tile never issues an OOB DMA;
        # the kernel masks its contribution to zero via the row-index mask.
        return (jnp.minimum(c * tiles_per_split + i, total_tiles - 1), 0)

    in_spec = pl.BlockSpec((tile_rows, _LANES), in_map)
    out_spec = pl.BlockSpec((None, 8, _LANES), lambda c, i: (c, 0, 0))

    if core_parallel is None:
        core_parallel = _is_v7x()
    if core_parallel and num_splits > 1:
        semantics = (pltpu.CORE_PARALLEL, pltpu.ARBITRARY)
    else:
        semantics = ("parallel", "arbitrary")

    kernel = functools.partial(
        _laplacian_kernel, a=a, inv_2b=inv_2b, tile_rows=tile_rows,
        rows=rows, tiles_per_split=tiles_per_split,
        needs_partial=needs_partial)

    n_elems = int(pred2.size)
    bytes_accessed = n_elems * (pred2.dtype.itemsize + gt2.dtype.itemsize
                                + conf2.dtype.itemsize)
    cost = pl.CostEstimate(flops=14 * n_elems, transcendentals=2 * n_elems,
                           bytes_accessed=bytes_accessed)

    sums, cnts = pl.pallas_call(
        kernel,
        out_shape=(
            jax.ShapeDtypeStruct((num_splits, 8, _LANES), jnp.float32),
            jax.ShapeDtypeStruct((num_splits, 8, _LANES), jnp.float32),
        ),
        grid_spec=pltpu.PrefetchScalarGridSpec(
            num_scalar_prefetch=0,
            grid=(num_splits, tiles_per_split),
            in_specs=[in_spec, in_spec, in_spec],
            out_specs=(out_spec, out_spec),
        ),
        compiler_params=pltpu.CompilerParams(dimension_semantics=semantics),
        cost_estimate=cost,
    )(pred2, gt2, conf2)

    # Final cross-lane reduce + masked mean (tiny JAX glue).
    total = jnp.sum(sums) + tail_sum
    count = jnp.sum(cnts) + tail_cnt
    # count == 0 yields NaN, matching PyTorch's mean over an empty mask.
    return (total / count).astype(jnp.float32)


def _reference(predictions, gt, conf, a=3.0, b=3.0):
    mask = gt > 0
    conf = 2.0 * a * (jax.nn.sigmoid(conf / b) - 0.5)
    vals = jnp.abs(gt - predictions) / jnp.exp(conf) + conf
    return jnp.sum(jnp.where(mask, vals, 0.0)) / jnp.sum(mask)


if __name__ == "__main__":
    key = jax.random.PRNGKey(0)
    k1, k2, k3 = jax.random.split(key, 3)

    # NCHW inputs, matching the typical depth-loss usage of this module.
    shape = (2, 4, 16, 16)
    predictions = jax.random.normal(k1, shape, dtype=jnp.float32)
    gt = jax.random.normal(k2, shape, dtype=jnp.float32)  # ~half > 0 mask
    conf = jax.random.normal(k3, shape, dtype=jnp.float32)

    loss = laplacian_loss_bounded2(predictions, gt, conf, a=3.0, b=3.0)
    loss = jax.block_until_ready(loss)

    ref = _reference(predictions, gt, conf)
    assert jnp.allclose(loss, ref, rtol=1e-5, atol=1e-5), (loss, ref)

    # Also exercise an unaligned size (ragged tail + partial tile paths).
    m = 5 * 7 * 13 * 11 + 37   # not a multiple of 128
    p2 = jax.random.normal(k1, (m,), dtype=jnp.float32)
    g2 = jax.random.normal(k2, (m,), dtype=jnp.float32)
    c2 = jax.random.normal(k3, (m,), dtype=jnp.float32)
    loss2 = jax.block_until_ready(laplacian_loss_bounded2(p2, g2, c2))
    ref2 = _reference(p2, g2, c2)
    assert jnp.allclose(loss2, ref2, rtol=1e-5, atol=1e-5), (loss2, ref2)

    print("KERNEL_OK")
</pallas_src>

<mosaic_0001>
module attributes {stable_mosaic.version = 11 : i64} {
  func.func @_laplacian_kernel(%arg0: i32, %arg1: i32, %arg2: memref<16x128xf32, #tpu.memory_space<vmem>>, %arg3: memref<16x128xf32, #tpu.memory_space<vmem>>, %arg4: memref<16x128xf32, #tpu.memory_space<vmem>>, %arg5: memref<1x8x128xf32, #tpu.memory_space<vmem>>, %arg6: memref<1x8x128xf32, #tpu.memory_space<vmem>>) attributes {dimension_semantics = [#tpu.dimension_semantics<parallel>, #tpu.dimension_semantics<arbitrary>], iteration_bounds = array<i64: 1, 1>, scalar_prefetch = 0 : i64, scratch_operands = 0 : i64, tpu.core_type = #tpu.core_type<tc>, window_params = [{transform_indices = @transform_0, window_bounds = array<i64: 16, 128>}, {transform_indices = @transform_1, window_bounds = array<i64: 16, 128>}, {transform_indices = @transform_2, window_bounds = array<i64: 16, 128>}, {transform_indices = @transform_3, window_bounds = array<i64: 1, 8, 128>}, {transform_indices = @transform_4, window_bounds = array<i64: 1, 8, 128>}]} {
    %c0_i32 = arith.constant 0 : i32
    %0 = arith.cmpi eq, %arg1, %c0_i32 : i32
    %1 = arith.extui %0 : i1 to i32
    %c0_i32_0 = arith.constant 0 : i32
    %2 = arith.cmpi ne, %1, %c0_i32_0 : i32
    scf.if %2 {
      %cst_24 = arith.constant 0.000000e+00 : f32
      %40 = vector.broadcast %cst_24 : f32 to vector<8x128xf32>
      %c0_25 = arith.constant 0 : index
      %c0_26 = arith.constant 0 : index
      %c0_27 = arith.constant 0 : index
      %41 = vector.load %arg5[%c0_25, %c0_26, %c0_27] : memref<1x8x128xf32, #tpu.memory_space<vmem>>, vector<1x8x128xf32>
      %42 = vector.shape_cast %41 : vector<1x8x128xf32> to vector<8x128xf32>
      %43 = vector.shape_cast %40 : vector<8x128xf32> to vector<1x8x128xf32>
      tpu.vector_store %arg5[%c0_25, %c0_26, %c0_27], %43 {strides = array<i32>} : memref<1x8x128xf32, #tpu.memory_space<vmem>>, vector<1x8x128xf32>,
      %cst_28 = arith.constant 0.000000e+00 : f32
      %44 = vector.broadcast %cst_28 : f32 to vector<8x128xf32>
      %c0_29 = arith.constant 0 : index
      %c0_30 = arith.constant 0 : index
      %c0_31 = arith.constant 0 : index
      %45 = vector.load %arg6[%c0_29, %c0_30, %c0_31] : memref<1x8x128xf32, #tpu.memory_space<vmem>>, vector<1x8x128xf32>
      %46 = vector.shape_cast %45 : vector<1x8x128xf32> to vector<8x128xf32>
      %47 = vector.shape_cast %44 : vector<8x128xf32> to vector<1x8x128xf32>
      tpu.vector_store %arg6[%c0_29, %c0_30, %c0_31], %47 {strides = array<i32>} : memref<1x8x128xf32, #tpu.memory_space<vmem>>, vector<1x8x128xf32>,
    } else {
    }
    %c0 = arith.constant 0 : index
    %c0_1 = arith.constant 0 : index
    %3 = vector.load %arg3[%c0, %c0_1] : memref<16x128xf32, #tpu.memory_space<vmem>>, vector<16x128xf32>
    %c0_2 = arith.constant 0 : index
    %c0_3 = arith.constant 0 : index
    %4 = vector.load %arg2[%c0_2, %c0_3] : memref<16x128xf32, #tpu.memory_space<vmem>>, vector<16x128xf32>
    %c0_4 = arith.constant 0 : index
    %c0_5 = arith.constant 0 : index
    %5 = vector.load %arg4[%c0_4, %c0_5] : memref<16x128xf32, #tpu.memory_space<vmem>>, vector<16x128xf32>
    %cst = arith.constant 0.000000e+00 : f32
    %6 = vector.broadcast %cst : f32 to vector<16x128xf32>
    %7 = arith.cmpf ogt, %3, %6 : vector<16x128xf32>
    %cst_6 = arith.constant 0.166666672 : f32
    %8 = vector.broadcast %cst_6 : f32 to vector<16x128xf32>
    %9 = arith.mulf %5, %8 : vector<16x128xf32>
    %10 = math.tanh %9 : vector<16x128xf32>
    %cst_7 = arith.constant 3.000000e+00 : f32
    %11 = vector.broadcast %cst_7 : f32 to vector<16x128xf32>
    %12 = arith.mulf %11, %10 : vector<16x128xf32>
    %13 = arith.subf %3, %4 : vector<16x128xf32>
    %14 = math.absf %13 : vector<16x128xf32>
    %cst_8 = arith.constant 0.000000e+00 : f32
    %15 = vector.broadcast %cst_8 : f32 to vector<16x128xf32>
    %16 = arith.subf %15, %12 : vector<16x128xf32>
    %17 = math.exp %16 : vector<16x128xf32>
    %18 = arith.mulf %14, %17 : vector<16x128xf32>
    %19 = arith.addf %18, %12 : vector<16x128xf32>
    %cst_9 = arith.constant 0.000000e+00 : f32
    %20 = vector.broadcast %cst_9 : f32 to vector<16x128xf32>
    %21 = arith.select %7, %19, %20 : vector<16x128xi1>, vector<16x128xf32>
    %22 = arith.extui %7 : vector<16x128xi1> to vector<16x128xi32>
    %23 = arith.sitofp %22 : vector<16x128xi32> to vector<16x128xf32>
    %c0_10 = arith.constant 0 : index
    %c0_11 = arith.constant 0 : index
    %c0_12 = arith.constant 0 : index
    %24 = vector.load %arg5[%c0_10, %c0_11, %c0_12] : memref<1x8x128xf32, #tpu.memory_space<vmem>>, vector<1x8x128xf32>
    %25 = vector.shape_cast %24 : vector<1x8x128xf32> to vector<8x128xf32>
    %26 = vector.shape_cast %21 : vector<16x128xf32> to vector<2x8x128xf32>
    %cst_13 = arith.constant dense<0.000000e+00> : vector<8x128xf32>
    %27 = vector.multi_reduction <add>, %26, %cst_13 [0] : vector<2x8x128xf32> to vector<8x128xf32>
    %28 = arith.addf %25, %27 : vector<8x128xf32>
    %c0_14 = arith.constant 0 : index
    %c0_15 = arith.constant 0 : index
    %c0_16 = arith.constant 0 : index
    %29 = vector.load %arg5[%c0_14, %c0_15, %c0_16] : memref<1x8x128xf32, #tpu.memory_space<vmem>>, vector<1x8x128xf32>
    %30 = vector.shape_cast %29 : vector<1x8x128xf32> to vector<8x128xf32>
    %31 = vector.shape_cast %28 : vector<8x128xf32> to vector<1x8x128xf32>
    tpu.vector_store %arg5[%c0_14, %c0_15, %c0_16], %31 {strides = array<i32>} : memref<1x8x128xf32, #tpu.memory_space<vmem>>, vector<1x8x128xf32>,
    %c0_17 = arith.constant 0 : index
    %c0_18 = arith.constant 0 : index
    %c0_19 = arith.constant 0 : index
    %32 = vector.load %arg6[%c0_17, %c0_18, %c0_19] : memref<1x8x128xf32, #tpu.memory_space<vmem>>, vector<1x8x128xf32>
    %33 = vector.shape_cast %32 : vector<1x8x128xf32> to vector<8x128xf32>
    %34 = vector.shape_cast %23 : vector<16x128xf32> to vector<2x8x128xf32>
    %cst_20 = arith.constant dense<0.000000e+00> : vector<8x128xf32>
    %35 = vector.multi_reduction <add>, %34, %cst_20 [0] : vector<2x8x128xf32> to vector<8x128xf32>
    %36 = arith.addf %33, %35 : vector<8x128xf32>
    %c0_21 = arith.constant 0 : index
    %c0_22 = arith.constant 0 : index
    %c0_23 = arith.constant 0 : index
    %37 = vector.load %arg6[%c0_21, %c0_22, %c0_23] : memref<1x8x128xf32, #tpu.memory_space<vmem>>, vector<1x8x128xf32>
    %38 = vector.shape_cast %37 : vector<1x8x128xf32> to vector<8x128xf32>
    %39 = vector.shape_cast %36 : vector<8x128xf32> to vector<1x8x128xf32>
    tpu.vector_store %arg6[%c0_21, %c0_22, %c0_23], %39 {strides = array<i32>} : memref<1x8x128xf32, #tpu.memory_space<vmem>>, vector<1x8x128xf32>,
    return
  }
  func.func @transform_0(%arg0: i32, %arg1: i32) -> (i32, i32) {
    %c1_i32 = arith.constant 1 : i32
    %0 = arith.muli %arg0, %c1_i32 : i32
    %1 = arith.addi %0, %arg1 : i32
    %c0_i32 = arith.constant 0 : i32
    %2 = arith.minsi %1, %c0_i32 : i32
    %c0_i32_0 = arith.constant 0 : i32
    %c0_i32_1 = arith.constant 0 : i32
    return %2, %c0_i32_0 : i32, i32
  }
  func.func @transform_1(%arg0: i32, %arg1: i32) -> (i32, i32) {
    %c1_i32 = arith.constant 1 : i32
    %0 = arith.muli %arg0, %c1_i32 : i32
    %1 = arith.addi %0, %arg1 : i32
    %c0_i32 = arith.constant 0 : i32
    %2 = arith.minsi %1, %c0_i32 : i32
    %c0_i32_0 = arith.constant 0 : i32
    %c0_i32_1 = arith.constant 0 : i32
    return %2, %c0_i32_0 : i32, i32
  }
  func.func @transform_2(%arg0: i32, %arg1: i32) -> (i32, i32) {
    %c1_i32 = arith.constant 1 : i32
    %0 = arith.muli %arg0, %c1_i32 : i32
    %1 = arith.addi %0, %arg1 : i32
    %c0_i32 = arith.constant 0 : i32
    %2 = arith.minsi %1, %c0_i32 : i32
    %c0_i32_0 = arith.constant 0 : i32
    %c0_i32_1 = arith.constant 0 : i32
    return %2, %c0_i32_0 : i32, i32
  }
  func.func @transform_3(%arg0: i32, %arg1: i32) -> (i32, i32, i32) {
    %c0_i32 = arith.constant 0 : i32
    %c0_i32_0 = arith.constant 0 : i32
    %c0_i32_1 = arith.constant 0 : i32
    return %arg0, %c0_i32, %c0_i32_0 : i32, i32, i32
  }
  func.func @transform_4(%arg0: i32, %arg1: i32) -> (i32, i32, i32) {
    %c0_i32 = arith.constant 0 : i32
    %c0_i32_0 = arith.constant 0 : i32
    %c0_i32_1 = arith.constant 0 : i32
    return %arg0, %c0_i32, %c0_i32_0 : i32, i32, i32
  }
}

</mosaic_0001>

<llo_original>
// kernel: tpu_custom_call.1
$region0: #{tpu_custom_call.1}
  #allocation0 [shape = 'u32[]', space=smem, size = 0x4, offset = 0x4, fixed_abs, tag = 'smem constant byte address 0x4 - core index']
  #allocation1 [shape = 'u32[144,128]{1,0:T(1,128)}', space=vmem, size = 0x12000, scoped, tag = 'internal scratch']
  %s0 = inlined_call_operand.hbm [shape: f32[16,128], index: 0, kind: input, shape index: {}]
  %s1 = inlined_call_operand.hbm [shape: f32[16,128], index: 1, kind: input, shape index: {}]
  %s2 = inlined_call_operand.hbm [shape: f32[16,128], index: 2, kind: input, shape index: {}]
  %s3 = inlined_call_operand.hbm [shape: f32[1,8,128], index: 3, kind: output, shape index: {0}]
  %s4 = inlined_call_operand.hbm [shape: f32[1,8,128], index: 4, kind: output, shape index: {1}]
  %5 = xla_tuple %s3, %s4
  %s6 = sld [smem:[#allocation0]]
  $region46: #{tpu_custom_call.1} parent=0
    _
  %s8 = ssub.s32 1, %s6
  %s9 = scalar_select 0, %s8, %s6
  $region1: #{tpu_custom_call.1} parent=0
    #allocation2 [shape = 'u8[8192]{0}', space=vmem, size = 0x2000, scoped, tag = 'input window, operand 0, single buffered']
    #allocation3 [shape = 's32[1]{0}', space=sflag, size = 0x4, scoped, tag = 'scoped memory for tpu_custom_call.1']
    #allocation4 [shape = 's32[1]{0}', space=sflag, size = 0x4, scoped, tag = 'scoped memory for tpu_custom_call.1']
    #allocation5 [shape = 'u8[8192]{0}', space=vmem, size = 0x2000, scoped, tag = 'input window, operand 1, single buffered']
    #allocation6 [shape = 's32[1]{0}', space=sflag, size = 0x4, scoped, tag = 'scoped memory for tpu_custom_call.1']
    #allocation7 [shape = 'u8[8192]{0}', space=vmem, size = 0x2000, scoped, tag = 'input window, operand 2, single buffered']
    #allocation8 [shape = 'u8[4096]{0}', space=vmem, size = 0x1000, scoped, tag = 'output window, operand 0, single buffered']
    #allocation9 [shape = 'u8[4096]{0}', space=vmem, size = 0x1000, scoped, tag = 'output window, operand 1, single buffered']
    #allocation10 [shape = 's32[1]{0}', space=sflag, size = 0x4, scoped, tag = 'scoped memory for tpu_custom_call.1']
    %10 = vsyncpa [#allocation3], 0
    %11 = vsyncpa [#allocation6], 0
    %12 = vsyncpa [#allocation4], 0
    %13 = vsyncpa [#allocation10], 0
    // Predicated region
    $region2: #{tpu_custom_call.1} parent=1 // pred_check
      _
    $region3: #{tpu_custom_call.1} parent=1 // pred_check_branch
      %15 = sbr.rel (0) target = $region5
    $region4: #{tpu_custom_call.1} parent=1 // pred_region
      %s16 = sadd.s32 0, 0
      %p17 = scmp.lt.s32.totalorder %s16, 0
      %s18 = scalar_select %p17, %s16, 0
      %s19 = smul.u32 2, %s18
      %s21 = ssub.s32 256, 256
      %22 = vsyncadd [#allocation3], %s21
      %s23 = smul.addr %s19, 128
      %s24 = scalar_lea.hbm %s0, %s23
      %s25 = sshll.u32 [#allocation2], 4
      %s26 = int_to_ptr.vmem [resolvable:$true] %s25
      %31 = dma.hbm_to_vmem [thread:$0]  %s24, 256, %s26, [#allocation3], 128, 128, 8
    $region5: #{tpu_custom_call.1} parent=1 // pred_fallthru
      _
    // Predicated region
    $region6: #{tpu_custom_call.1} parent=1 // pred_check
      _
    $region7: #{tpu_custom_call.1} parent=1 // pred_check_branch
      %33 = sbr.rel (0) target = $region9
    $region8: #{tpu_custom_call.1} parent=1 // pred_region
      %s34 = sadd.s32 0, 0
      %p35 = scmp.lt.s32.totalorder %s34, 0
      %s36 = scalar_select %p35, %s34, 0
      %s37 = smul.u32 2, %s36
      %s39 = ssub.s32 256, 256
      %40 = vsyncadd [#allocation6], %s39
      %s41 = smul.addr %s37, 128
      %s42 = scalar_lea.hbm %s1, %s41
      %s43 = sshll.u32 [#allocation5], 4
      %s44 = int_to_ptr.vmem [resolvable:$true] %s43
      %49 = dma.hbm_to_vmem [thread:$0]  %s42, 256, %s44, [#allocation6], 128, 128, 8
    $region9: #{tpu_custom_call.1} parent=1 // pred_fallthru
      _
    // Predicated region
    $region10: #{tpu_custom_call.1} parent=1 // pred_check
      _
    $region11: #{tpu_custom_call.1} parent=1 // pred_check_branch
      %51 = sbr.rel (0) target = $region13
    $region12: #{tpu_custom_call.1} parent=1 // pred_region
      %s52 = sadd.s32 0, 0
      %p53 = scmp.lt.s32.totalorder %s52, 0
      %s54 = scalar_select %p53, %s52, 0
      %s55 = smul.u32 2, %s54
      %s57 = ssub.s32 256, 256
      %58 = vsyncadd [#allocation6], %s57
      %s59 = smul.addr %s55, 128
      %s60 = scalar_lea.hbm %s2, %s59
      %s61 = sshll.u32 [#allocation7], 4
      %s62 = int_to_ptr.vmem [resolvable:$true] %s61
      %67 = dma.hbm_to_vmem [thread:$0]  %s60, 256, %s62, [#allocation6], 128, 128, 8
    $region13: #{tpu_custom_call.1} parent=1 // pred_fallthru
      _
    // Predicated region
    $region14: #{tpu_custom_call.1} parent=1 // pred_check
      _
    $region15: #{tpu_custom_call.1} parent=1 // pred_check_branch
      %69 = sbr.rel (0) target = $region17
    $region16: #{tpu_custom_call.1} parent=1 // pred_region
      %70 = dma.done [#allocation3], 256
    $region17: #{tpu_custom_call.1} parent=1 // pred_fallthru
      _
    // Predicated region
    $region18: #{tpu_custom_call.1} parent=1 // pred_check
      _
    $region19: #{tpu_custom_call.1} parent=1 // pred_check_branch
      %72 = sbr.rel (0) target = $region21
    $region20: #{tpu_custom_call.1} parent=1 // pred_region
      %73 = dma.done [#allocation6], 256
    $region21: #{tpu_custom_call.1} parent=1 // pred_fallthru
      _
    // Predicated region
    $region22: #{tpu_custom_call.1} parent=1 // pred_check
      _
    $region23: #{tpu_custom_call.1} parent=1 // pred_check_branch
      %75 = sbr.rel (0) target = $region25
    $region24: #{tpu_custom_call.1} parent=1 // pred_region
      %76 = dma.done [#allocation6], 256
    $region25: #{tpu_custom_call.1} parent=1 // pred_fallthru
      _
    %s77 = sadd.s32 0, 0
    %p78 = scmp.lt.s32.totalorder %s77, 0
    %s79 = scalar_select %p78, %s77, 0
    %s80 = smul.u32 2, %s79
    %s81 = sadd.s32 0, 0
    %p82 = scmp.lt.s32.totalorder %s81, 0
    %s83 = scalar_select %p82, %s81, 0
    %s84 = smul.u32 2, %s83
    %s85 = sadd.s32 0, 0
    %p86 = scmp.lt.s32.totalorder %s85, 0
    %s87 = scalar_select %p86, %s85, 0
    %s88 = smul.u32 2, %s87
    %p89 = scmp.eq.s32.totalorder 0, 0
    // Predicated region
    $region26: #{tpu_custom_call.1} parent=1 // pred_check
      %p90 = pneg %p89
    $region27: #{tpu_custom_call.1} parent=1 // pred_check_branch
      %92 = sbr.rel (%p90) target = $region29
    $region28: #{tpu_custom_call.1} parent=1 // pred_region
      %93 = vst [vmem:[#allocation8] sm:$0xff] 0.0
      %94 = vst [vmem:[#allocation9] sm:$0xff] 0.0
    $region29: #{tpu_custom_call.1} parent=1 // pred_fallthru
      _
    %v95 = vld [vmem:[#allocation5] sm:$0xff]
    %v96 = vld [vmem:[#allocation5 + $0x8] sm:$0xff]
    %v97 = vld [vmem:[#allocation2] sm:$0xff]
    %v98 = vld [vmem:[#allocation2 + $0x8] sm:$0xff]
    %v99 = vld [vmem:[#allocation7] sm:$0xff]
    %v100 = vld [vmem:[#allocation7 + $0x8] sm:$0xff]
    %vm101 = vcmp.gt.f32.partialorder %v95, 0.0
    %vm102 = vcmp.gt.f32.partialorder %v96, 0.0
    %v103 = vmul.f32 %v99, 0.16666667
    %v104 = vmul.f32 %v100, 0.16666667
    %v105 = vtanh.pop %v103
    %v106 = vtanh.pop %v104
    %v107 = vmul.f32 %v105, 3.0
    %v108 = vmul.f32 %v106, 3.0
    %v109 = vsub.f32 %v95, %v97
    %v110 = vsub.f32 %v96, %v98
    %v111 = vand.u32 2147483647, %v109
    %v112 = vand.u32 2147483647, %v110
    %v113 = vsub.f32 0.0, %v107
    %v114 = vsub.f32 0.0, %v108
    %v115 = vmul.f32 %v113, 1.442695
    %v116 = vpow.pop %v115
    %v117 = vmul.f32 %v114, 1.442695
    %v118 = vpow.pop %v117
    %v119 = vmul.f32 %v111, %v116
    %v120 = vmul.f32 %v112, %v118
    %v121 = vadd.f32 %v119, %v107
    %v122 = vadd.f32 %v120, %v108
    %v123 = vsel %vm101, %v121, 0.0
    %v124 = vsel %vm102, %v122, 0.0
    %v125 = vsel %vm101, 1, 0
    %v126 = vsel %vm102, 1, 0
    %v127 = vcvt.s32.f32 %v125
    %v128 = vcvt.s32.f32 %v126
    %v129 = vld [vmem:[#allocation8] sm:$0xff]
    %v130 = vadd.f32 %v123, %v124
    %v131 = vadd.f32 %v129, %v130
    %132 = vst [vmem:[#allocation8] sm:$0xff] %v131
    %v133 = vld [vmem:[#allocation9] sm:$0xff]
    %v134 = vadd.f32 %v127, %v128
    %v135 = vadd.f32 %v133, %v134
    %136 = vst [vmem:[#allocation9] sm:$0xff] %v135
    // Predicated region
    $region30: #{tpu_custom_call.1} parent=1 // pred_check
      _
    $region31: #{tpu_custom_call.1} parent=1 // pred_check_branch
      %138 = sbr.rel (0) target = $region33
    $region32: #{tpu_custom_call.1} parent=1 // pred_region
      %s140 = ssub.s32 128, 128
      %141 = vsyncadd [#allocation4], %s140
      %s143 = sshll.u32 [#allocation8], 4
      %s144 = int_to_ptr.vmem [resolvable:$true] %s143
      %146 = dma.vmem_to_hbm [thread:$0]  %s144, 128, %s3, [#allocation4]
    $region33: #{tpu_custom_call.1} parent=1 // pred_fallthru
      _
    // Predicated region
    $region34: #{tpu_custom_call.1} parent=1 // pred_check
      _
    $region35: #{tpu_custom_call.1} parent=1 // pred_check_branch
      %148 = sbr.rel (0) target = $region37
    $region36: #{tpu_custom_call.1} parent=1 // pred_region
      %s150 = ssub.s32 128, 128
      %151 = vsyncadd [#allocation10], %s150
      %s153 = sshll.u32 [#allocation9], 4
      %s154 = int_to_ptr.vmem [resolvable:$true] %s153
      %156 = dma.vmem_to_hbm [thread:$0]  %s154, 128, %s4, [#allocation10]
    $region37: #{tpu_custom_call.1} parent=1 // pred_fallthru
      _
    // Predicated region
    $region38: #{tpu_custom_call.1} parent=1 // pred_check
      _
    $region39: #{tpu_custom_call.1} parent=1 // pred_check_branch
      %158 = sbr.rel (0) target = $region41
    $region40: #{tpu_custom_call.1} parent=1 // pred_region
      %159 = dma.done [#allocation4], 128
    $region41: #{tpu_custom_call.1} parent=1 // pred_fallthru
      _
    // Predicated region
    $region42: #{tpu_custom_call.1} parent=1 // pred_check
      _
    $region43: #{tpu_custom_call.1} parent=1 // pred_check_branch
      %161 = sbr.rel (0) target = $region45
    $region44: #{tpu_custom_call.1} parent=1 // pred_region
      %162 = dma.done [#allocation10], 128
    $region45: #{tpu_custom_call.1} parent=1 // pred_fallthru
      _
    %163 = vsyncpa [#allocation3], 1
    %164 = vsyncpa [#allocation6], 1
    %165 = vsyncpa [#allocation4], 1
    %166 = vsyncpa [#allocation10], 1

</llo_original>
